<compile_context>
chip_gen: v6e
topology: v6e:2x2x1
jax: 0.10.0
libtpu: 0.0.40
codegen_flags: <defaults>
</compile_context>

<pallas_src>
import numpy as np
import jax
import jax.numpy as jnp
from jax.experimental import pallas as pl
from jax.experimental.pallas import tpu as pltpu


# ----------------------------- Pallas kernel --------------------------------

def mujoco_actor_kernel(x_ref, w1_ref, b1_ref, w2_ref, b2_ref, wh_ref, bh_ref,
                        alpha_ref, beta_ref):
    """Fused: a=tanh(x@w1+b1); a=tanh(a@w2+b2); z=a@wh+bh;
    alpha,beta = softplus(z)+1 split in half along lanes."""
    x = x_ref[...]
    a = jnp.tanh(
        jnp.dot(x, w1_ref[...], preferred_element_type=jnp.float32) + b1_ref[...]
    )
    a = jnp.tanh(
        jnp.dot(a, w2_ref[...], preferred_element_type=jnp.float32) + b2_ref[...]
    )
    z = jnp.dot(a, wh_ref[...], preferred_element_type=jnp.float32) + bh_ref[...]
    # Numerically stable softplus (matches torch.F.softplus within f32), plus 1.
    sp = jnp.maximum(z, 0.0) + jnp.log(1.0 + jnp.exp(-jnp.abs(z))) + 1.0
    act_dim = alpha_ref.shape[-1]
    alpha_ref[...] = sp[:, :act_dim]
    beta_ref[...] = sp[:, act_dim:2 * act_dim]


# ------------------------------ wrapper --------------------------------------

def _round_up(x, m):
    return ((x + m - 1) // m) * m


def mujoco_actor_forward(obs, params, *, block_b=256):
    """obs: (B, obs_dim) f32 -> (alpha (B, act_dim), beta (B, act_dim)),
    identical semantics to Mujoco_Actor.forward."""
    obs = obs.astype(jnp.float32)
    B, obs_dim = obs.shape
    w1, b1 = params["w1"], params["b1"]
    w2, b2 = params["w2"], params["b2"]
    wh, bh = params["wh"], params["bh"]
    hidden = w1.shape[1]
    two_a = wh.shape[1]
    act_dim = two_a // 2

    # Tile the batch: TB rows per grid step (multiple of 8 sublanes), pad batch.
    TB = min(block_b, _round_up(B, 8))
    BP = _round_up(B, TB)
    if BP != B:
        obs = jnp.pad(obs, ((0, BP - B), (0, 0)))

    def full_spec(*shape):
        return pl.BlockSpec(shape, lambda i: (0,) * len(shape))

    alpha, beta = pl.pallas_call(
        mujoco_actor_kernel,
        out_shape=(
            jax.ShapeDtypeStruct((BP, act_dim), jnp.float32),
            jax.ShapeDtypeStruct((BP, act_dim), jnp.float32),
        ),
        grid=(BP // TB,),
        in_specs=[
            pl.BlockSpec((TB, obs_dim), lambda i: (i, 0)),   # obs: tiled over batch
            full_spec(obs_dim, hidden), full_spec(1, hidden),  # w1, b1 (VMEM-resident)
            full_spec(hidden, hidden), full_spec(1, hidden),   # w2, b2
            full_spec(hidden, two_a), full_spec(1, two_a),     # concat heads
        ],
        out_specs=(
            pl.BlockSpec((TB, act_dim), lambda i: (i, 0)),
            pl.BlockSpec((TB, act_dim), lambda i: (i, 0)),
        ),
        compiler_params=pltpu.CompilerParams(
            dimension_semantics=("parallel",),
        ),
    )(obs, w1, b1, w2, b2, wh, bh)

    return alpha[:B], beta[:B]


def evaluate_mode(obs, params):
    """mode = alpha / (alpha + beta), like Mujoco_Actor.evaluate_mode."""
    alpha, beta = mujoco_actor_forward(obs, params)
    return alpha / (alpha + beta)


# ----------------------------- parameter init --------------------------------

def init_params(obs_dim, act_dim, key, hidden=150):
    """torch nn.Linear-style U(-1/sqrt(fan_in), 1/sqrt(fan_in)) init.
    Weights stored transposed (in, out) for x @ W; biases stored as (1, out);
    alpha/beta head weights concatenated along the output axis."""
    keys = jax.random.split(key, 8)

    def linear(kw, kb, fan_in, fan_out):
        bound = 1.0 / float(np.sqrt(fan_in))
        w = jax.random.uniform(kw, (fan_in, fan_out), jnp.float32, -bound, bound)
        b = jax.random.uniform(kb, (1, fan_out), jnp.float32, -bound, bound)
        return w, b

    w1, b1 = linear(keys[0], keys[1], obs_dim, hidden)
    w2, b2 = linear(keys[2], keys[3], hidden, hidden)
    wa, ba = linear(keys[4], keys[5], hidden, act_dim)   # alpha_head
    wb, bb = linear(keys[6], keys[7], hidden, act_dim)   # beta_head
    return {
        "w1": w1, "b1": b1,
        "w2": w2, "b2": b2,
        "wh": jnp.concatenate([wa, wb], axis=1),
        "bh": jnp.concatenate([ba, bb], axis=1),
    }


# ----------------------------- pure-JAX reference ----------------------------

def reference_forward(obs, params):
    a = jnp.tanh(obs @ params["w1"] + params["b1"])
    a = jnp.tanh(a @ params["w2"] + params["b2"])
    z = a @ params["wh"] + params["bh"]
    sp = jax.nn.softplus(z) + 1.0
    act_dim = params["wh"].shape[1] // 2
    return sp[:, :act_dim], sp[:, act_dim:]


# ---------------------------------- main --------------------------------------

if __name__ == "__main__":
    obs_dim, act_dim, batch = 17, 6, 2

    key = jax.random.PRNGKey(0)
    k_param, k_obs, k_obs2 = jax.random.split(key, 3)
    params = init_params(obs_dim, act_dim, k_param)

    # Small deterministic input (batch=2), like a single PPO minibatch row pair.
    obs = jax.random.normal(k_obs, (batch, obs_dim), jnp.float32)

    alpha, beta = mujoco_actor_forward(obs, params)
    alpha, beta = jax.block_until_ready((alpha, beta))

    assert alpha.shape == (batch, act_dim), alpha.shape
    assert beta.shape == (batch, act_dim), beta.shape

    ra, rb = reference_forward(obs, params)
    np.testing.assert_allclose(np.asarray(alpha), np.asarray(ra), rtol=1e-5, atol=1e-5)
    np.testing.assert_allclose(np.asarray(beta), np.asarray(rb), rtol=1e-5, atol=1e-5)
    assert np.all(np.asarray(alpha) >= 1.0) and np.all(np.asarray(beta) >= 1.0)

    # Exercise the batch grid + padding path (grid > 1, non-multiple batch).
    obs_big = jax.random.normal(k_obs2, (333, obs_dim), jnp.float32)
    a_big, b_big = jax.block_until_ready(mujoco_actor_forward(obs_big, params))
    ra_big, rb_big = reference_forward(obs_big, params)
    np.testing.assert_allclose(np.asarray(a_big), np.asarray(ra_big), rtol=1e-5, atol=1e-5)
    np.testing.assert_allclose(np.asarray(b_big), np.asarray(rb_big), rtol=1e-5, atol=1e-5)

    # TODO(synk): get_dist() constructs a torch.distributions.Beta object; only the
    # (alpha, beta) parameters are produced here.
    print("KERNEL_OK")
</pallas_src>

<mosaic_0001>
module attributes {stable_mosaic.version = 11 : i64} {
  func.func @mujoco_actor_kernel(%arg0: i32, %arg1: memref<8x17xf32, #tpu.memory_space<vmem>>, %arg2: memref<17x150xf32, #tpu.memory_space<vmem>>, %arg3: memref<1x150xf32, #tpu.memory_space<vmem>>, %arg4: memref<150x150xf32, #tpu.memory_space<vmem>>, %arg5: memref<1x150xf32, #tpu.memory_space<vmem>>, %arg6: memref<150x12xf32, #tpu.memory_space<vmem>>, %arg7: memref<1x12xf32, #tpu.memory_space<vmem>>, %arg8: memref<8x6xf32, #tpu.memory_space<vmem>>, %arg9: memref<8x6xf32, #tpu.memory_space<vmem>>) attributes {dimension_semantics = [#tpu.dimension_semantics<parallel>], iteration_bounds = array<i64: 1>, scalar_prefetch = 0 : i64, scratch_operands = 0 : i64, tpu.core_type = #tpu.core_type<tc>, window_params = [{transform_indices = @transform_0, window_bounds = array<i64: 8, 17>}, {pipeline_mode = #tpu.pipeline_mode<synchronous>, transform_indices = @transform_1, window_bounds = array<i64: 17, 150>}, {pipeline_mode = #tpu.pipeline_mode<synchronous>, transform_indices = @transform_2, window_bounds = array<i64: 1, 150>}, {pipeline_mode = #tpu.pipeline_mode<synchronous>, transform_indices = @transform_3, window_bounds = array<i64: 150, 150>}, {pipeline_mode = #tpu.pipeline_mode<synchronous>, transform_indices = @transform_4, window_bounds = array<i64: 1, 150>}, {pipeline_mode = #tpu.pipeline_mode<synchronous>, transform_indices = @transform_5, window_bounds = array<i64: 150, 12>}, {pipeline_mode = #tpu.pipeline_mode<synchronous>, transform_indices = @transform_6, window_bounds = array<i64: 1, 12>}, {transform_indices = @transform_7, window_bounds = array<i64: 8, 6>}, {transform_indices = @transform_8, window_bounds = array<i64: 8, 6>}]} {
    %c0 = arith.constant 0 : index
    %c0_0 = arith.constant 0 : index
    %0 = vector.load %arg1[%c0, %c0_0] : memref<8x17xf32, #tpu.memory_space<vmem>>, vector<8x17xf32>
    %c0_1 = arith.constant 0 : index
    %c0_2 = arith.constant 0 : index
    %1 = vector.load %arg2[%c0_1, %c0_2] : memref<17x150xf32, #tpu.memory_space<vmem>>, vector<17x150xf32>
    %cst = arith.constant dense<0.000000e+00> : vector<8x150xf32>
    %2 = tpu.matmul %0, %1, %cst {dimension_numbers = #tpu.dot_dimension_numbers<[1], [0], [0], [1], [0, 0, 1, 1], [], []>} : vector<8x17xf32>, vector<17x150xf32>, vector<8x150xf32> -> vector<8x150xf32>
    %c0_3 = arith.constant 0 : index
    %c0_4 = arith.constant 0 : index
    %3 = vector.load %arg3[%c0_3, %c0_4] : memref<1x150xf32, #tpu.memory_space<vmem>>, vector<1x150xf32>
    %4 = vector.broadcast %3 : vector<1x150xf32> to vector<8x150xf32>
    %5 = arith.addf %2, %4 : vector<8x150xf32>
    %6 = math.tanh %5 : vector<8x150xf32>
    %c0_5 = arith.constant 0 : index
    %c0_6 = arith.constant 0 : index
    %7 = vector.load %arg4[%c0_5, %c0_6] : memref<150x150xf32, #tpu.memory_space<vmem>>, vector<150x150xf32>
    %cst_7 = arith.constant dense<0.000000e+00> : vector<8x150xf32>
    %8 = tpu.matmul %6, %7, %cst_7 {dimension_numbers = #tpu.dot_dimension_numbers<[1], [0], [0], [1], [0, 0, 1, 1], [], []>} : vector<8x150xf32>, vector<150x150xf32>, vector<8x150xf32> -> vector<8x150xf32>
    %c0_8 = arith.constant 0 : index
    %c0_9 = arith.constant 0 : index
    %9 = vector.load %arg5[%c0_8, %c0_9] : memref<1x150xf32, #tpu.memory_space<vmem>>, vector<1x150xf32>
    %10 = vector.broadcast %9 : vector<1x150xf32> to vector<8x150xf32>
    %11 = arith.addf %8, %10 : vector<8x150xf32>
    %12 = math.tanh %11 : vector<8x150xf32>
    %c0_10 = arith.constant 0 : index
    %c0_11 = arith.constant 0 : index
    %13 = vector.load %arg6[%c0_10, %c0_11] : memref<150x12xf32, #tpu.memory_space<vmem>>, vector<150x12xf32>
    %cst_12 = arith.constant dense<0.000000e+00> : vector<8x12xf32>
    %14 = tpu.matmul %12, %13, %cst_12 {dimension_numbers = #tpu.dot_dimension_numbers<[1], [0], [0], [1], [0, 0, 1, 1], [], []>} : vector<8x150xf32>, vector<150x12xf32>, vector<8x12xf32> -> vector<8x12xf32>
    %c0_13 = arith.constant 0 : index
    %c0_14 = arith.constant 0 : index
    %15 = vector.load %arg7[%c0_13, %c0_14] : memref<1x12xf32, #tpu.memory_space<vmem>>, vector<1x12xf32>
    %16 = vector.broadcast %15 : vector<1x12xf32> to vector<8x12xf32>
    %17 = arith.addf %14, %16 : vector<8x12xf32>
    %cst_15 = arith.constant 0.000000e+00 : f32
    %18 = vector.broadcast %cst_15 : f32 to vector<8x12xf32>
    %19 = arith.maximumf %17, %18 : vector<8x12xf32>
    %20 = math.absf %17 : vector<8x12xf32>
    %cst_16 = arith.constant 0.000000e+00 : f32
    %21 = vector.broadcast %cst_16 : f32 to vector<8x12xf32>
    %22 = arith.subf %21, %20 : vector<8x12xf32>
    %23 = math.exp %22 : vector<8x12xf32>
    %cst_17 = arith.constant 1.000000e+00 : f32
    %24 = vector.broadcast %cst_17 : f32 to vector<8x12xf32>
    %25 = arith.addf %24, %23 : vector<8x12xf32>
    %26 = math.log %25 : vector<8x12xf32>
    %27 = arith.addf %19, %26 : vector<8x12xf32>
    %cst_18 = arith.constant 1.000000e+00 : f32
    %28 = vector.broadcast %cst_18 : f32 to vector<8x12xf32>
    %29 = arith.addf %27, %28 : vector<8x12xf32>
    %30 = vector.extract_strided_slice %29 {offsets = [0, 0], sizes = [8, 6], strides = [1, 1]} : vector<8x12xf32> to vector<8x6xf32>
    %c0_19 = arith.constant 0 : index
    %c0_20 = arith.constant 0 : index
    %31 = vector.load %arg8[%c0_19, %c0_20] : memref<8x6xf32, #tpu.memory_space<vmem>>, vector<8x6xf32>
    tpu.vector_store %arg8[%c0_19, %c0_20], %30 {strides = array<i32>} : memref<8x6xf32, #tpu.memory_space<vmem>>, vector<8x6xf32>,
    %32 = vector.extract_strided_slice %29 {offsets = [0, 6], sizes = [8, 6], strides = [1, 1]} : vector<8x12xf32> to vector<8x6xf32>
    %c0_21 = arith.constant 0 : index
    %c0_22 = arith.constant 0 : index
    %33 = vector.load %arg9[%c0_21, %c0_22] : memref<8x6xf32, #tpu.memory_space<vmem>>, vector<8x6xf32>
    tpu.vector_store %arg9[%c0_21, %c0_22], %32 {strides = array<i32>} : memref<8x6xf32, #tpu.memory_space<vmem>>, vector<8x6xf32>,
    return
  }
  func.func @transform_0(%arg0: i32) -> (i32, i32) {
    %c0_i32 = arith.constant 0 : i32
    %c0_i32_0 = arith.constant 0 : i32
    return %arg0, %c0_i32 : i32, i32
  }
  func.func @transform_1(%arg0: i32) -> (i32, i32) {
    %c0_i32 = arith.constant 0 : i32
    %c0_i32_0 = arith.constant 0 : i32
    %c0_i32_1 = arith.constant 0 : i32
    return %c0_i32, %c0_i32_0 : i32, i32
  }
  func.func @transform_2(%arg0: i32) -> (i32, i32) {
    %c0_i32 = arith.constant 0 : i32
    %c0_i32_0 = arith.constant 0 : i32
    %c0_i32_1 = arith.constant 0 : i32
    return %c0_i32, %c0_i32_0 : i32, i32
  }
  func.func @transform_3(%arg0: i32) -> (i32, i32) {
    %c0_i32 = arith.constant 0 : i32
    %c0_i32_0 = arith.constant 0 : i32
    %c0_i32_1 = arith.constant 0 : i32
    return %c0_i32, %c0_i32_0 : i32, i32
  }
  func.func @transform_4(%arg0: i32) -> (i32, i32) {
    %c0_i32 = arith.constant 0 : i32
    %c0_i32_0 = arith.constant 0 : i32
    %c0_i32_1 = arith.constant 0 : i32
    return %c0_i32, %c0_i32_0 : i32, i32
  }
  func.func @transform_5(%arg0: i32) -> (i32, i32) {
    %c0_i32 = arith.constant 0 : i32
    %c0_i32_0 = arith.constant 0 : i32
    %c0_i32_1 = arith.constant 0 : i32
    return %c0_i32, %c0_i32_0 : i32, i32
  }
  func.func @transform_6(%arg0: i32) -> (i32, i32) {
    %c0_i32 = arith.constant 0 : i32
    %c0_i32_0 = arith.constant 0 : i32
    %c0_i32_1 = arith.constant 0 : i32
    return %c0_i32, %c0_i32_0 : i32, i32
  }
  func.func @transform_7(%arg0: i32) -> (i32, i32) {
    %c0_i32 = arith.constant 0 : i32
    %c0_i32_0 = arith.constant 0 : i32
    return %arg0, %c0_i32 : i32, i32
  }
  func.func @transform_8(%arg0: i32) -> (i32, i32) {
    %c0_i32 = arith.constant 0 : i32
    %c0_i32_0 = arith.constant 0 : i32
    return %arg0, %c0_i32 : i32, i32
  }
}

</mosaic_0001>

<llo_original>
// kernel: tpu_custom_call.1
$region0: #{tpu_custom_call.1}
  #allocation0 [shape = 'u32[]', space=smem, size = 0x4, offset = 0x4, fixed_abs, tag = 'smem constant byte address 0x4 - core index']
  #allocation1 [shape = 'u32[144,128]{1,0:T(1,128)}', space=vmem, size = 0x12000, scoped, tag = 'internal scratch']
  %s0 = inlined_call_operand.vmem [shape: f32[8,17], index: 0, kind: input, shape index: {}]
  %s1 = inlined_call_operand.vmem [shape: f32[17,150], index: 1, kind: input, shape index: {}]
  %s2 = inlined_call_operand.vmem [shape: f32[1,150], index: 2, kind: input, shape index: {}]
  %s3 = inlined_call_operand.hbm [shape: f32[150,150], index: 3, kind: input, shape index: {}]
  %s4 = inlined_call_operand.vmem [shape: f32[1,150], index: 4, kind: input, shape index: {}]
  %s5 = inlined_call_operand.vmem [shape: f32[150,12], index: 5, kind: input, shape index: {}]
  %s6 = inlined_call_operand.vmem [shape: f32[1,12], index: 6, kind: input, shape index: {}]
  %s7 = inlined_call_operand.hbm [shape: f32[8,6], index: 7, kind: output, shape index: {0}]
  %s8 = inlined_call_operand.hbm [shape: f32[8,6], index: 8, kind: output, shape index: {1}]
  %9 = xla_tuple %s7, %s8
  %s10 = sld [smem:[#allocation0]]
  $region50: #{tpu_custom_call.1} parent=0
    _
  %s12 = ssub.s32 1, %s10
  %s13 = scalar_select 0, %s12, %s10
  $region1: #{tpu_custom_call.1} parent=0
    #allocation2 [shape = 'u8[155648]{0}', space=vmem, size = 0x26000, scoped, tag = 'input window, operand 3, single buffered']
    #allocation3 [shape = 's32[1]{0}', space=sflag, size = 0x4, scoped, tag = 'scoped memory for tpu_custom_call.1']
    #allocation4 [shape = 's32[1]{0}', space=sflag, size = 0x4, scoped, tag = 'scoped memory for tpu_custom_call.1']
    #allocation5 [shape = 'u8[4096]{0}', space=vmem, size = 0x1000, scoped, tag = 'output window, operand 0, single buffered']
    #allocation6 [shape = 'u8[4096]{0}', space=vmem, size = 0x1000, scoped, tag = 'output window, operand 1, single buffered']
    #allocation7 [shape = 's32[1]{0}', space=sflag, size = 0x4, scoped, tag = 'scoped memory for tpu_custom_call.1']
    %14 = vsyncpa [#allocation3], 0
    %15 = vsyncpa [#allocation4], 0
    %16 = vsyncpa [#allocation7], 0
    // Predicated region
    $region2: #{tpu_custom_call.1} parent=1 // pred_check
      _
    $region3: #{tpu_custom_call.1} parent=1 // pred_check_branch
      %18 = sbr.rel (0) target = $region5
    $region4: #{tpu_custom_call.1} parent=1 // pred_region
      _
    $region5: #{tpu_custom_call.1} parent=1 // pred_fallthru
      _
    // Predicated region
    $region6: #{tpu_custom_call.1} parent=1 // pred_check
      _
    $region7: #{tpu_custom_call.1} parent=1 // pred_check_branch
      %20 = sbr.rel (0) target = $region9
    $region8: #{tpu_custom_call.1} parent=1 // pred_region
      _
    $region9: #{tpu_custom_call.1} parent=1 // pred_fallthru
      _
    // Predicated region
    $region10: #{tpu_custom_call.1} parent=1 // pred_check
      _
    $region11: #{tpu_custom_call.1} parent=1 // pred_check_branch
      %22 = sbr.rel (0) target = $region13
    $region12: #{tpu_custom_call.1} parent=1 // pred_region
      _
    $region13: #{tpu_custom_call.1} parent=1 // pred_fallthru
      _
    // Predicated region
    $region14: #{tpu_custom_call.1} parent=1 // pred_check
      _
    $region15: #{tpu_custom_call.1} parent=1 // pred_check_branch
      %24 = sbr.rel (0) target = $region17
    $region16: #{tpu_custom_call.1} parent=1 // pred_region
      %s26 = ssub.s32 4864, 4864
      %27 = vsyncadd [#allocation3], %s26
      %s28 = sshll.u32 [#allocation2], 4
      %s29 = int_to_ptr.vmem [resolvable:$true] %s28
      %34 = dma.hbm_to_vmem [thread:$0]  %s3, 4864, %s29, [#allocation3], 256, 256, 16
    $region17: #{tpu_custom_call.1} parent=1 // pred_fallthru
      _
    // Predicated region
    $region18: #{tpu_custom_call.1} parent=1 // pred_check
      _
    $region19: #{tpu_custom_call.1} parent=1 // pred_check_branch
      %36 = sbr.rel (0) target = $region21
    $region20: #{tpu_custom_call.1} parent=1 // pred_region
      _
    $region21: #{tpu_custom_call.1} parent=1 // pred_fallthru
      _
    // Predicated region
    $region22: #{tpu_custom_call.1} parent=1 // pred_check
      _
    $region23: #{tpu_custom_call.1} parent=1 // pred_check_branch
      %38 = sbr.rel (0) target = $region25
    $region24: #{tpu_custom_call.1} parent=1 // pred_region
      _
    $region25: #{tpu_custom_call.1} parent=1 // pred_fallthru
      _
    // Predicated region
    $region26: #{tpu_custom_call.1} parent=1 // pred_check
      _
    $region27: #{tpu_custom_call.1} parent=1 // pred_check_branch
      %40 = sbr.rel (0) target = $region29
    $region28: #{tpu_custom_call.1} parent=1 // pred_region
      _
    $region29: #{tpu_custom_call.1} parent=1 // pred_fallthru
      _
    // Predicated region
    $region30: #{tpu_custom_call.1} parent=1 // pred_check
      _
    $region31: #{tpu_custom_call.1} parent=1 // pred_check_branch
      %42 = sbr.rel (0) target = $region33
    $region32: #{tpu_custom_call.1} parent=1 // pred_region
      %43 = dma.done [#allocation3], 4864
    $region33: #{tpu_custom_call.1} parent=1 // pred_fallthru
      _
    %v44 = vld [vmem:[%s0] sm:$0xff]
    %v45 = vld [vmem:[%s1] sm:$0xff]
    %v46 = vld [vmem:[%s1 + $0x8] sm:$0xff]
    %v47 = vld [vmem:[%s1 + $0x10] sm:$0xff]
    %v48 = vld [vmem:[%s1 + $0x18] sm:$0xff]
    %v49 = vld [vmem:[%s1 + $0x20] sm:$0x1]
    %v50 = vld [vmem:[%s1 + $0x28] sm:$0x1]
    %v51 = vld [vmem:[%s2] sm:$0x3]
    %v53 = vlaneseq
    %v54 = vshrl.u32 %v53, 7
    %v55 = vsub.s32 0, %v54
    %v56 = vrot.slane %v51, %v55
    %v57 = vlaneseq
    %v58 = vshrl.u32 %v57, 7
    %v59 = vsub.s32 1, %v58
    %v60 = vrot.slane %v51, %v59
    %vm63 = vcmask 138240
    %v65 = vsel %vm63, %v44, 0
    %vm67 = vcmask 1040384
    %v69 = vsel %vm67, %v49, 0
    %v72 = vsel %vm67, %v50, 0
    %74 = vmatprep.subr.mxu0 0.0
    %75 = vmatpush1.msra.mxu0 0.0
    %76 = vmatprep.subr.mxu0 0.0
    %77 = vmatpush1.msra.mxu0 0.0
    %78 = vmatprep.subr.mxu0 0.0
    %79 = vmatpush1.msra.mxu0 0.0
    %80 = vmatprep.subr.mxu0 0.0
    %81 = vmatpush1.msra.mxu0 0.0
    %82 = vmatprep.subr.mxu0 0.0
    %83 = vmatpush1.msra.mxu0 0.0
    %84 = vmatprep.subr.mxu0 0.0
    %85 = vmatpush1.msra.mxu0 0.0
    %86 = vmatprep.subr.mxu0 0.0
    %87 = vmatpush1.msra.mxu0 0.0
    %88 = vmatprep.subr.mxu0 0.0
    %89 = vmatpush1.msra.mxu0 0.0
    %90 = vmatprep.subr.mxu0 0.0
    %91 = vmatpush1.msra.mxu0 0.0
    %92 = vmatprep.subr.mxu0 0.0
    %93 = vmatpush1.msra.mxu0 0.0
    %94 = vmatprep.subr.mxu0 0.0
    %95 = vmatpush1.msra.mxu0 0.0
    %96 = vmatprep.subr.mxu0 0.0
    %97 = vmatpush1.msra.mxu0 0.0
    %98 = vmatprep.subr.mxu0 0.0
    %99 = vmatpush1.msra.mxu0 0.0
    %100 = vmatprep.subr.mxu0 %v72
    %101 = vmatpush1.msra.mxu0 %v69
    %102 = vmatprep.subr.mxu0 %v48
    %103 = vmatpush1.msra.mxu0 %v47
    %104 = vmatprep.subr.mxu0 %v46
    %105 = vmatpush1.msra.mxu0 %v45
    %106 = vmatprep.subr.mxu0 0.0
    %107 = vmatpush2.msra.mxu0 0.0
    %108 = vmatprep.subr.mxu0 0.0
    %109 = vmatpush2.msra.mxu0 0.0
    %110 = vmatprep.subr.mxu0 0.0
    %111 = vmatpush2.msra.mxu0 0.0
    %112 = vmatprep.subr.mxu0 0.0
    %113 = vmatpush2.msra.mxu0 0.0
    %114 = vmatprep.subr.mxu0 0.0
    %115 = vmatpush2.msra.mxu0 0.0
    %116 = vmatprep.subr.mxu0 0.0
    %117 = vmatpush2.msra.mxu0 0.0
    %118 = vmatprep.subr.mxu0 0.0
    %119 = vmatpush2.msra.mxu0 0.0
    %120 = vmatprep.subr.mxu0 0.0
    %121 = vmatpush2.msra.mxu0 0.0
    %122 = vmatprep.subr.mxu0 0.0
    %123 = vmatpush2.msra.mxu0 0.0
    %124 = vmatprep.subr.mxu0 0.0
    %125 = vmatpush2.msra.mxu0 0.0
    %126 = vmatprep.subr.mxu0 0.0
    %127 = vmatpush2.msra.mxu0 0.0
    %128 = vmatprep.subr.mxu0 0.0
    %129 = vmatpush2.msra.mxu0 0.0
    %130 = vmatprep.subr.mxu0 0.0
    %131 = vmatpush2.msra.mxu0 0.0
    %132 = vmatprep.subr.mxu0 0.0
    %133 = vmatpush2.msra.mxu0 0.0
    %134 = vmatprep.subr.mxu0 0.0
    %135 = vmatpush2.msra.mxu0 0.0
    %136 = vmatprep.subr.mxu0 0.0
    %137 = vmatpush2.msra.mxu0 0.0
    %138 = vmatprep.mubr.f32.mxu0 0.0
    %139 = vmatmul.mubr.f32.gmra.mxu0 %v65
    %v140 = vpop.f32.mrf.mxu0
    %v141 = vadd.f32 %v56, %v140
    %v142 = vpop.f32.mrf.mxu0
    %v143 = vadd.f32 %v60, %v142
    %144 = vdwg.mxu0
    %v145 = vtanh.pop %v141
    %v146 = vtanh.pop %v143
    %v147 = vld [vmem:[#allocation2] sm:$0xff]
    %v148 = vld [vmem:[#allocation2 + $0x8] sm:$0xff]
    %v149 = vld [vmem:[#allocation2 + $0x10] sm:$0xff]
    %v150 = vld [vmem:[#allocation2 + $0x18] sm:$0xff]
    %v151 = vld [vmem:[#allocation2 + $0x20] sm:$0xff]
    %v152 = vld [vmem:[#allocation2 + $0x28] sm:$0xff]
    %v153 = vld [vmem:[#allocation2 + $0x30] sm:$0xff]
    %v154 = vld [vmem:[#allocation2 + $0x38] sm:$0xff]
    %v155 = vld [vmem:[#allocation2 + $0x40] sm:$0xff]
    %v156 = vld [vmem:[#allocation2 + $0x48] sm:$0xff]
    %v157 = vld [vmem:[#allocation2 + $0x50] sm:$0xff]
    %v158 = vld [vmem:[#allocation2 + $0x58] sm:$0xff]
    %v159 = vld [vmem:[#allocation2 + $0x60] sm:$0xff]
    %v160 = vld [vmem:[#allocation2 + $0x68] sm:$0xff]
    %v161 = vld [vmem:[#allocation2 + $0x70] sm:$0xff]
    %v162 = vld [vmem:[#allocation2 + $0x78] sm:$0xff]
    %v163 = vld [vmem:[#allocation2 + $0x80] sm:$0xff]
    %v164 = vld [vmem:[#allocation2 + $0x88] sm:$0xff]
    %v165 = vld [vmem:[#allocation2 + $0x90] sm:$0xff]
    %v166 = vld [vmem:[#allocation2 + $0x98] sm:$0xff]
    %v167 = vld [vmem:[#allocation2 + $0xa0] sm:$0xff]
    %v168 = vld [vmem:[#allocation2 + $0xa8] sm:$0xff]
    %v169 = vld [vmem:[#allocation2 + $0xb0] sm:$0xff]
    %v170 = vld [vmem:[#allocation2 + $0xb8] sm:$0xff]
    %v171 = vld [vmem:[#allocation2 + $0xc0] sm:$0xff]
    %v172 = vld [vmem:[#allocation2 + $0xc8] sm:$0xff]
    %v173 = vld [vmem:[#allocation2 + $0xd0] sm:$0xff]
    %v174 = vld [vmem:[#allocation2 + $0xd8] sm:$0xff]
    %v175 = vld [vmem:[#allocation2 + $0xe0] sm:$0xff]
    %v176 = vld [vmem:[#allocation2 + $0xe8] sm:$0xff]
    %v177 = vld [vmem:[#allocation2 + $0xf0] sm:$0xff]
    %v178 = vld [vmem:[#allocation2 + $0xf8] sm:$0xff]
    %v179 = vld [vmem:[#allocation2 + $0x100] sm:$0xff]
    %v180 = vld [vmem:[#allocation2 + $0x108] sm:$0xff]
    %v181 = vld [vmem:[#allocation2 + $0x110] sm:$0xff]
    %v182 = vld [vmem:[#allocation2 + $0x118] sm:$0xff]
    %v183 = vld [vmem:[#allocation2 + $0x120] sm:$0x3f]
    %v184 = vld [vmem:[#allocation2 + $0x128] sm:$0x3f]
    %v185 = vld [vmem:[%s4] sm:$0x3]
    %v187 = vlaneseq
    %v188 = vshrl.u32 %v187, 7
    %v189 = vsub.s32 0, %v188
    %v190 = vrot.slane %v185, %v189
    %v191 = vlaneseq
    %v192 = vshrl.u32 %v191, 7
    %v193 = vsub.s32 1, %v192
    %v194 = vrot.slane %v185, %v193
    %vm197 = vcmask 179200
    %v199 = vsel %vm197, %v146, 0
    %vm201 = vcmask 1045504
    %v203 = vsel %vm201, %v183, 0
    %v206 = vsel %vm201, %v184, 0
    %208 = vmatprep.subr.mxu0 %v178
    %209 = vmatpush1.msra.mxu0 %v177
    %210 = vmatprep.subr.mxu0 %v176
    %211 = vmatpush1.msra.mxu0 %v175
    %212 = vmatprep.subr.mxu0 %v174
    %213 = vmatpush1.msra.mxu0 %v173
    %214 = vmatprep.subr.mxu0 %v172
    %215 = vmatpush1.msra.mxu0 %v171
    %216 = vmatprep.subr.mxu0 %v170
    %217 = vmatpush1.msra.mxu0 %v169
    %218 = vmatprep.subr.mxu0 %v168
    %219 = vmatpush1.msra.mxu0 %v167
    %220 = vmatprep.subr.mxu0 %v166
    %221 = vmatpush1.msra.mxu0 %v165
    %222 = vmatprep.subr.mxu0 %v164
    %223 = vmatpush1.msra.mxu0 %v163
    %224 = vmatprep.subr.mxu0 %v162
    %225 = vmatpush1.msra.mxu0 %v161
    %226 = vmatprep.subr.mxu0 %v160
    %227 = vmatpush1.msra.mxu0 %v159
    %228 = vmatprep.subr.mxu0 %v158
    %229 = vmatpush1.msra.mxu0 %v157
    %230 = vmatprep.subr.mxu0 %v156
    %231 = vmatpush1.msra.mxu0 %v155
    %232 = vmatprep.subr.mxu0 %v154
    %233 = vmatpush1.msra.mxu0 %v153
    %234 = vmatprep.subr.mxu0 %v152
    %235 = vmatpush1.msra.mxu0 %v151
    %236 = vmatprep.subr.mxu0 %v150
    %237 = vmatpush1.msra.mxu0 %v149
    %238 = vmatprep.subr.mxu0 %v148
    %239 = vmatpush1.msra.mxu0 %v147
    %240 = vmatprep.subr.mxu0 0.0
    %241 = vmatpush2.msra.mxu0 0.0
    %242 = vmatprep.subr.mxu0 0.0
    %243 = vmatpush2.msra.mxu0 0.0
    %244 = vmatprep.subr.mxu0 0.0
    %245 = vmatpush2.msra.mxu0 0.0
    %246 = vmatprep.subr.mxu0 0.0
    %247 = vmatpush2.msra.mxu0 0.0
    %248 = vmatprep.subr.mxu0 0.0
    %249 = vmatpush2.msra.mxu0 0.0
    %250 = vmatprep.subr.mxu0 0.0
    %251 = vmatpush2.msra.mxu0 0.0
    %252 = vmatprep.subr.mxu0 0.0
    %253 = vmatpush2.msra.mxu0 0.0
    %254 = vmatprep.subr.mxu0 0.0
    %255 = vmatpush2.msra.mxu0 0.0
    %256 = vmatprep.subr.mxu0 0.0
    %257 = vmatpush2.msra.mxu0 0.0
    %258 = vmatprep.subr.mxu0 0.0
    %259 = vmatpush2.msra.mxu0 0.0
    %260 = vmatprep.subr.mxu0 0.0
    %261 = vmatpush2.msra.mxu0 0.0
    %262 = vmatprep.subr.mxu0 0.0
    %263 = vmatpush2.msra.mxu0 0.0
    %264 = vmatprep.subr.mxu0 0.0
    %265 = vmatpush2.msra.mxu0 0.0
    %266 = vmatprep.subr.mxu0 %v206
    %267 = vmatpush2.msra.mxu0 %v203
    %268 = vmatprep.subr.mxu0 %v182
    %269 = vmatpush2.msra.mxu0 %v181
    %270 = vmatprep.subr.mxu0 %v180
    %271 = vmatpush2.msra.mxu0 %v179
    %272 = vmatprep.mubr.f32.mxu0 %v199
    %273 = vmatmul.mubr.f32.gmra.mxu0 %v145
    %v274 = vpop.f32.mrf.mxu0
    %v275 = vadd.f32 %v190, %v274
    %v276 = vpop.f32.mrf.mxu0
    %v277 = vadd.f32 %v194, %v276
    %278 = vdwg.mxu0
    %v279 = vtanh.pop %v275
    %v280 = vtanh.pop %v277
    %v281 = vld [vmem:[%s5] sm:$0xff]
    %v282 = vld [vmem:[%s5 + $0x8] sm:$0xff]
    %v283 = vld [vmem:[%s5 + $0x10] sm:$0xff]
    %v284 = vld [vmem:[%s5 + $0x18] sm:$0xff]
    %v285 = vld [vmem:[%s5 + $0x20] sm:$0xff]
    %v286 = vld [vmem:[%s5 + $0x28] sm:$0xff]
    %v287 = vld [vmem:[%s5 + $0x30] sm:$0xff]
    %v288 = vld [vmem:[%s5 + $0x38] sm:$0xff]
    %v289 = vld [vmem:[%s5 + $0x40] sm:$0xff]
    %v290 = vld [vmem:[%s5 + $0x48] sm:$0xff]
    %v291 = vld [vmem:[%s5 + $0x50] sm:$0xff]
    %v292 = vld [vmem:[%s5 + $0x58] sm:$0xff]
    %v293 = vld [vmem:[%s5 + $0x60] sm:$0xff]
    %v294 = vld [vmem:[%s5 + $0x68] sm:$0xff]
    %v295 = vld [vmem:[%s5 + $0x70] sm:$0xff]
    %v296 = vld [vmem:[%s5 + $0x78] sm:$0xff]
    %v297 = vld [vmem:[%s5 + $0x80] sm:$0xff]
    %v298 = vld [vmem:[%s5 + $0x88] sm:$0xff]
    %v299 = vld [vmem:[%s5 + $0x90] sm:$0x3f]
    %v300 = vld [vmem:[%s6] sm:$0x1]
    %v302 = vlaneseq
    %v303 = vshrl.u32 %v302, 7
    %v304 = vsub.s32 0, %v303
    %v305 = vrot.slane %v300, %v304
    %v308 = vsel %vm197, %v280, 0
    %v311 = vsel %vm201, %v299, 0
    %313 = vmatprep.subr.mxu0 0.0
    %314 = vmatpush1.msra.mxu0 %v296
    %315 = vmatprep.subr.mxu0 0.0
    %316 = vmatpush1.msra.mxu0 %v295
    %317 = vmatprep.subr.mxu0 0.0
    %318 = vmatpush1.msra.mxu0 %v294
    %319 = vmatprep.subr.mxu0 0.0
    %320 = vmatpush1.msra.mxu0 %v293
    %321 = vmatprep.subr.mxu0 0.0
    %322 = vmatpush1.msra.mxu0 %v292
    %323 = vmatprep.subr.mxu0 0.0
    %324 = vmatpush1.msra.mxu0 %v291
    %325 = vmatprep.subr.mxu0 0.0
    %326 = vmatpush1.msra.mxu0 %v290
    %327 = vmatprep.subr.mxu0 0.0
    %328 = vmatpush1.msra.mxu0 %v289
    %329 = vmatprep.subr.mxu0 0.0
    %330 = vmatpush1.msra.mxu0 %v288
    %331 = vmatprep.subr.mxu0 0.0
    %332 = vmatpush1.msra.mxu0 %v287
    %333 = vmatprep.subr.mxu0 0.0
    %334 = vmatpush1.msra.mxu0 %v286
    %335 = vmatprep.subr.mxu0 0.0
    %336 = vmatpush1.msra.mxu0 %v285
    %337 = vmatprep.subr.mxu0 0.0
    %338 = vmatpush1.msra.mxu0 %v284
    %339 = vmatprep.subr.mxu0 0.0
    %340 = vmatpush1.msra.mxu0 %v283
    %341 = vmatprep.subr.mxu0 0.0
    %342 = vmatpush1.msra.mxu0 %v282
    %343 = vmatprep.subr.mxu0 0.0
    %344 = vmatpush1.msra.mxu0 %v281
    %345 = vmatprep.subr.mxu0 0.0
    %346 = vmatpush2.msra.mxu0 0.0
    %347 = vmatprep.subr.mxu0 0.0
    %348 = vmatpush2.msra.mxu0 0.0
    %349 = vmatprep.subr.mxu0 0.0
    %350 = vmatpush2.msra.mxu0 0.0
    %351 = vmatprep.subr.mxu0 0.0
    %352 = vmatpush2.msra.mxu0 0.0
    %353 = vmatprep.subr.mxu0 0.0
    %354 = vmatpush2.msra.mxu0 0.0
    %355 = vmatprep.subr.mxu0 0.0
    %356 = vmatpush2.msra.mxu0 0.0
    %357 = vmatprep.subr.mxu0 0.0
    %358 = vmatpush2.msra.mxu0 0.0
    %359 = vmatprep.subr.mxu0 0.0
    %360 = vmatpush2.msra.mxu0 0.0
    %361 = vmatprep.subr.mxu0 0.0
    %362 = vmatpush2.msra.mxu0 0.0
    %363 = vmatprep.subr.mxu0 0.0
    %364 = vmatpush2.msra.mxu0 0.0
    %365 = vmatprep.subr.mxu0 0.0
    %366 = vmatpush2.msra.mxu0 0.0
    %367 = vmatprep.subr.mxu0 0.0
    %368 = vmatpush2.msra.mxu0 0.0
    %369 = vmatprep.subr.mxu0 0.0
    %370 = vmatpush2.msra.mxu0 0.0
    %371 = vmatprep.subr.mxu0 0.0
    %372 = vmatpush2.msra.mxu0 %v311
    %373 = vmatprep.subr.mxu0 0.0
    %374 = vmatpush2.msra.mxu0 %v298
    %375 = vmatprep.subr.mxu0 0.0
    %376 = vmatpush2.msra.mxu0 %v297
    %377 = vmatprep.mubr.f32.mxu0 %v308
    %378 = vmatmul.mubr.f32.gmra.mxu0 %v279
    %v379 = vpop.f32.mrf.mxu0
    %v380 = vadd.f32 %v305, %v379
    %v381 = vpop.f32.mrf.mxu0
    %382 = vdwg.mxu0
    %v383 = vmax.f32 %v380, 0.0
    %v384 = vand.u32 2147483647, %v380
    %v385 = vsub.f32 0.0, %v384
    %v386 = vmul.f32 %v385, 1.442695
    %v387 = vpow.pop %v386
    %v388 = vadd.f32 %v387, 1.0
    %v389 = vlog2.pop %v388
    %v390 = vmul.f32 %v389, 0.6931472
    %v391 = vadd.f32 %v383, %v390
    %v392 = vadd.f32 %v391, 1.0
    %vm393 = vcmask 48128
    %394 = vst.msk [vmem:[#allocation5] sm:$0xff] %vm393, %v392
    %396 = vrot.lane.b32.xlu0 %v392, 122
    %v397 = vpop.permute.xlu0 %396
    %399 = vst.msk [vmem:[#allocation6] sm:$0xff] %vm393, %v397
    // Predicated region
    $region34: #{tpu_custom_call.1} parent=1 // pred_check
      _
    $region35: #{tpu_custom_call.1} parent=1 // pred_check_branch
      %401 = sbr.rel (0) target = $region37
    $region36: #{tpu_custom_call.1} parent=1 // pred_region
      %s403 = ssub.s32 128, 128
      %404 = vsyncadd [#allocation4], %s403
      %s406 = sshll.u32 [#allocation5], 4
      %s407 = int_to_ptr.vmem [resolvable:$true] %s406
      %409 = dma.vmem_to_hbm [thread:$0]  %s407, 128, %s7, [#allocation4]
    $region37: #{tpu_custom_call.1} parent=1 // pred_fallthru
      _
    // Predicated region
    $region38: #{tpu_custom_call.1} parent=1 // pred_check
      _
    $region39: #{tpu_custom_call.1} parent=1 // pred_check_branch
      %411 = sbr.rel (0) target = $region41
    $region40: #{tpu_custom_call.1} parent=1 // pred_region
      %s413 = ssub.s32 128, 128
      %414 = vsyncadd [#allocation7], %s413
      %s416 = sshll.u32 [#allocation6], 4
      %s417 = int_to_ptr.vmem [resolvable:$true] %s416
      %419 = dma.vmem_to_hbm [thread:$0]  %s417, 128, %s8, [#allocation7]
    $region41: #{tpu_custom_call.1} parent=1 // pred_fallthru
      _
    // Predicated region
    $region42: #{tpu_custom_call.1} parent=1 // pred_check
      _
    $region43: #{tpu_custom_call.1} parent=1 // pred_check_branch
      %421 = sbr.rel (0) target = $region45
    $region44: #{tpu_custom_call.1} parent=1 // pred_region
      %422 = dma.done [#allocation4], 128
    $region45: #{tpu_custom_call.1} parent=1 // pred_fallthru
      _
    // Predicated region
    $region46: #{tpu_custom_call.1} parent=1 // pred_check
      _
    $region47: #{tpu_custom_call.1} parent=1 // pred_check_branch
      %424 = sbr.rel (0) target = $region49
    $region48: #{tpu_custom_call.1} parent=1 // pred_region
      %425 = dma.done [#allocation7], 128
    $region49: #{tpu_custom_call.1} parent=1 // pred_fallthru
      _
    %426 = vsyncpa [#allocation3], 1
    %427 = vsyncpa [#allocation4], 1
    %428 = vsyncpa [#allocation7], 1

</llo_original>
